<compile_context>
chip_gen: v7x
topology: tpu7x:2x2x1
jax: 0.10.0
libtpu: 0.0.40
codegen_flags: <defaults>
</compile_context>

<pallas_src>
import functools

import jax
import jax.numpy as jnp
from jax import lax
from jax.experimental import pallas as pl
from jax.experimental.pallas import tpu as pltpu


def _triplet_softmargin_kernel(lab_row_ref, lab_tile_ref, emb_tile_ref,
                               emb_full_ref, out_ref, sqrow_ref,
                               *, tile_m, batch):
    i = pl.program_id(0)
    last = pl.num_programs(0) - 1

    emb_t = emb_tile_ref[...]                       # (TM, D), input dtype
    emb_f = emb_full_ref[...]                       # (B, D),  input dtype (resident)

    # Gram stripe on the MXU, contracting the last axis of both operands
    # (no explicit transpose / relayout of the RHS).
    dot = lax.dot_general(
        emb_t, emb_f,
        dimension_numbers=(((1,), (1,)), ((), ())),
        preferred_element_type=jnp.float32)         # (TM, B) f32

    # Anchor (row) squared norms directly from the stripe; independent of the
    # matmul result, so this VPU work overlaps the MXU.
    et32 = emb_t.astype(jnp.float32)
    sq_col = jnp.sum(et32 * et32, axis=1, keepdims=True)       # (TM, 1)

    @pl.when(i == 0)
    def _init():
        # Column squared norms as a lane-major (1, B) row, computed once and
        # cached.  ones(8, D) @ (B, D)^T on the MXU avoids any sublane->lane
        # transpose; row 0 of the result is the norms.
        ef32 = emb_f.astype(jnp.float32)
        ones8 = jnp.ones((8, ef32.shape[1]), jnp.float32)
        sq_all = lax.dot_general(
            ones8, ef32 * ef32,
            dimension_numbers=(((1,), (1,)), ((), ())),
            preferred_element_type=jnp.float32)                 # (8, B)
        sqrow_ref[...] = sq_all[0:1, :]                         # (1, B)
        out_ref[...] = jnp.zeros_like(out_ref)

    sq_row = sqrow_ref[...]                                     # (1, B)

    # Pairwise (non-squared) euclidean distances with the reference's
    # epsilon trick.
    dist2 = jnp.maximum(sq_row - 2.0 * dot + sq_col, 0.0)       # (TM, B)
    zmask = (dist2 == 0.0).astype(jnp.float32)
    dist = (1.0 - zmask) * jnp.sqrt(dist2 + zmask * 1e-16)      # (TM, B)

    # Label masks (kept as bools; selects instead of float-mask arithmetic).
    lab_t = lab_tile_ref[...]                                   # (TM, 1) int32
    lab_r = lab_row_ref[...]                                    # (1, B)  int32
    labels_equal = lab_t == lab_r                               # (TM, B) bool

    row_ids = i * tile_m + lax.broadcasted_iota(jnp.int32, (tile_m, batch), 0)
    col_ids = lax.broadcasted_iota(jnp.int32, (tile_m, batch), 1)
    not_diag = row_ids != col_ids

    # Hardest positive: dist >= 0, so where(mask, dist, 0) == mask.float()*dist.
    pos_mask = jnp.logical_and(labels_equal, not_diag)
    hardest_positive = jnp.max(jnp.where(pos_mask, dist, 0.0),
                               axis=1, keepdims=True)           # (TM, 1)

    # Hardest negative: reference-exact additive-max trick written as a select
    # (where(labels_equal, dist + row_max, dist) == dist + row_max*(1-neg_mask)).
    max_neg = jnp.max(dist, axis=1, keepdims=True)              # (TM, 1)
    hardest_negative = jnp.min(jnp.where(labels_equal, dist + max_neg, dist),
                               axis=1, keepdims=True)           # (TM, 1)

    # Soft-margin loss for this stripe; accumulate the sum of row losses into
    # the resident output block (writeback to HBM happens only once, at end).
    tl = jnp.log1p(jnp.exp(hardest_positive - hardest_negative))   # (TM, 1)
    out_ref[...] += jnp.sum(tl, axis=0, keepdims=True)              # (1, 1)

    @pl.when(i == last)
    def _finalize():
        out_ref[...] = out_ref[...] * (1.0 / float(batch))


def _pick_tile_m(batch):
    # Stripe height: multiple of 8 (sublane granularity) that divides B, as
    # large as reasonable so per-step overhead amortizes.
    for tm in (256, 128, 64, 32, 16, 8):
        if tm <= batch and batch % tm == 0:
            return tm
    return batch


def batch_hard_soft_margin_triplet_loss(embeddings, labels, *, tile_m=None,
                                        vmem_limit_bytes=None):
    """embeddings: [B, D] float (f32 or bf16); labels: [B] int. -> scalar f32."""
    B, D = embeddings.shape
    if tile_m is None:
        tile_m = _pick_tile_m(B)
    assert B % tile_m == 0, (B, tile_m)
    grid = (B // tile_m,)

    lab = labels.astype(jnp.int32)
    lab_col = lab.reshape(B, 1)
    lab_row = lab.reshape(1, B)

    kernel = functools.partial(_triplet_softmargin_kernel,
                               tile_m=tile_m, batch=B)

    out = pl.pallas_call(
        kernel,
        out_shape=jax.ShapeDtypeStruct((1, 1), jnp.float32),
        grid=grid,
        in_specs=[
            pl.BlockSpec((1, B), lambda i: (0, 0)),        # labels row (resident)
            pl.BlockSpec((tile_m, 1), lambda i: (i, 0)),   # labels for stripe
            pl.BlockSpec((tile_m, D), lambda i: (i, 0)),   # embedding stripe
            pl.BlockSpec((B, D), lambda i: (0, 0)),        # full embeddings (resident)
        ],
        out_specs=pl.BlockSpec((1, 1), lambda i: (0, 0)),  # resident accumulator
        scratch_shapes=[pltpu.VMEM((1, B), jnp.float32)],  # cached column norms
        compiler_params=pltpu.CompilerParams(
            # Single grid axis is a reduction into the resident output block.
            dimension_semantics=("arbitrary",),
            vmem_limit_bytes=vmem_limit_bytes,
        ),
    )(lab_row, lab_col, embeddings, embeddings)
    return out[0, 0]


def _reference_loss(embeddings, labels):
    """Plain-JAX reference mirroring the PyTorch code (for verification)."""
    emb = embeddings.astype(jnp.float32)
    dot = emb @ emb.T
    sq = jnp.diag(dot)
    dist = sq[None, :] - 2.0 * dot + sq[:, None]
    dist = jnp.maximum(dist, 0.0)
    zmask = (dist == 0.0).astype(jnp.float32)
    dist = (1.0 - zmask) * jnp.sqrt(dist + zmask * 1e-16)

    eye = jnp.eye(labels.shape[0], dtype=bool)
    labels_equal = labels[None, :] == labels[:, None]
    mask_pos = (labels_equal & ~eye).astype(jnp.float32)
    mask_neg = (~labels_equal).astype(jnp.float32)

    hp = jnp.max(mask_pos * dist, axis=1, keepdims=True)
    max_neg = jnp.max(dist, axis=1, keepdims=True)
    hn = jnp.min(dist + max_neg * (1.0 - mask_neg), axis=1, keepdims=True)
    return jnp.mean(jnp.log1p(jnp.exp(hp - hn)))


if __name__ == "__main__":
    key = jax.random.PRNGKey(0)

    B, D = 32, 128
    # Integer-valued embeddings keep the Gram matrix exactly representable, so
    # the kernel/reference comparison is independent of MXU matmul precision.
    embeddings = jnp.round(jax.random.normal(key, (B, D), dtype=jnp.float32) * 2.0)
    labels = jnp.arange(B, dtype=jnp.int32) % 8     # 8 classes x 4 samples

    # tile_m=8 -> 4 grid steps, exercising the striped accumulator pipeline.
    loss = batch_hard_soft_margin_triplet_loss(embeddings, labels, tile_m=8)
    loss = jax.block_until_ready(loss)

    ref = jax.block_until_ready(_reference_loss(embeddings, labels))
    assert jnp.allclose(loss, ref, atol=1e-5, rtol=1e-5), (loss, ref)

    print("KERNEL_OK")
</pallas_src>

<mosaic_0001>
module attributes {stable_mosaic.version = 11 : i64} {
  func.func @_triplet_softmargin_kernel(%arg0: i32, %arg1: memref<1x32xi32, #tpu.memory_space<vmem>>, %arg2: memref<8x1xi32, #tpu.memory_space<vmem>>, %arg3: memref<8x128xf32, #tpu.memory_space<vmem>>, %arg4: memref<32x128xf32, #tpu.memory_space<vmem>>, %arg5: memref<1x1xf32, #tpu.memory_space<vmem>>, %arg6: memref<1x32xf32, #tpu.memory_space<vmem>>) attributes {dimension_semantics = [#tpu.dimension_semantics<arbitrary>], iteration_bounds = array<i64: 4>, scalar_prefetch = 0 : i64, scratch_operands = 1 : i64, tpu.core_type = #tpu.core_type<tc>, window_params = [{pipeline_mode = #tpu.pipeline_mode<synchronous>, transform_indices = @transform_0, window_bounds = array<i64: 1, 32>}, {transform_indices = @transform_1, window_bounds = array<i64: 8, 1>}, {transform_indices = @transform_2, window_bounds = array<i64: 8, 128>}, {pipeline_mode = #tpu.pipeline_mode<synchronous>, transform_indices = @transform_3, window_bounds = array<i64: 32, 128>}, {pipeline_mode = #tpu.pipeline_mode<synchronous>, transform_indices = @transform_4, window_bounds = array<i64: 1, 1>}]} {
    %c0 = arith.constant 0 : index
    %c0_0 = arith.constant 0 : index
    %0 = vector.load %arg3[%c0, %c0_0] : memref<8x128xf32, #tpu.memory_space<vmem>>, vector<8x128xf32>
    %c0_1 = arith.constant 0 : index
    %c0_2 = arith.constant 0 : index
    %1 = vector.load %arg4[%c0_1, %c0_2] : memref<32x128xf32, #tpu.memory_space<vmem>>, vector<32x128xf32>
    %cst = arith.constant dense<0.000000e+00> : vector<8x32xf32>
    %2 = tpu.matmul %0, %1, %cst {dimension_numbers = #tpu.dot_dimension_numbers<[1], [1], [0], [0], [0, 0, 1, 0], [], []>} : vector<8x128xf32>, vector<32x128xf32>, vector<8x32xf32> -> vector<8x32xf32>
    %3 = arith.mulf %0, %0 : vector<8x128xf32>
    %cst_3 = arith.constant dense<0.000000e+00> : vector<8xf32>
    %4 = vector.multi_reduction <add>, %3, %cst_3 [1] : vector<8x128xf32> to vector<8xf32>
    %5 = vector.shape_cast %4 : vector<8xf32> to vector<8x1xf32>
    %c0_i32 = arith.constant 0 : i32
    %6 = arith.cmpi eq, %arg0, %c0_i32 : i32
    %7 = arith.extui %6 : i1 to i32
    %c0_i32_4 = arith.constant 0 : i32
    %8 = arith.cmpi ne, %7, %c0_i32_4 : i32
    scf.if %8 {
      %cst_26 = arith.constant 1.000000e+00 : f32
      %63 = vector.broadcast %cst_26 : f32 to vector<8x128xf32>
      %64 = arith.mulf %1, %1 : vector<32x128xf32>
      %cst_27 = arith.constant dense<0.000000e+00> : vector<8x32xf32>
      %65 = tpu.matmul %63, %64, %cst_27 {dimension_numbers = #tpu.dot_dimension_numbers<[1], [1], [0], [0], [0, 0, 1, 0], [], []>} : vector<8x128xf32>, vector<32x128xf32>, vector<8x32xf32> -> vector<8x32xf32>
      %66 = vector.extract_strided_slice %65 {offsets = [0, 0], sizes = [1, 32], strides = [1, 1]} : vector<8x32xf32> to vector<1x32xf32>
      %c0_28 = arith.constant 0 : index
      %c0_29 = arith.constant 0 : index
      %67 = vector.load %arg6[%c0_28, %c0_29] : memref<1x32xf32, #tpu.memory_space<vmem>>, vector<1x32xf32>
      tpu.vector_store %arg6[%c0_28, %c0_29], %66 {strides = array<i32>} : memref<1x32xf32, #tpu.memory_space<vmem>>, vector<1x32xf32>,
      %cst_30 = arith.constant 0.000000e+00 : f32
      %68 = vector.broadcast %cst_30 : f32 to vector<1x1xf32>
      %c0_31 = arith.constant 0 : index
      %c0_32 = arith.constant 0 : index
      %69 = vector.load %arg5[%c0_31, %c0_32] : memref<1x1xf32, #tpu.memory_space<vmem>>, vector<1x1xf32>
      tpu.vector_store %arg5[%c0_31, %c0_32], %68 {strides = array<i32>} : memref<1x1xf32, #tpu.memory_space<vmem>>, vector<1x1xf32>,
    } else {
    }
    %c0_5 = arith.constant 0 : index
    %c0_6 = arith.constant 0 : index
    %9 = vector.load %arg6[%c0_5, %c0_6] : memref<1x32xf32, #tpu.memory_space<vmem>>, vector<1x32xf32>
    %cst_7 = arith.constant 2.000000e+00 : f32
    %10 = vector.broadcast %cst_7 : f32 to vector<8x32xf32>
    %11 = arith.mulf %10, %2 : vector<8x32xf32>
    %12 = vector.broadcast %9 : vector<1x32xf32> to vector<8x32xf32>
    %13 = arith.subf %12, %11 : vector<8x32xf32>
    %14 = vector.broadcast %5 : vector<8x1xf32> to vector<8x32xf32>
    %15 = arith.addf %13, %14 : vector<8x32xf32>
    %cst_8 = arith.constant 0.000000e+00 : f32
    %16 = vector.broadcast %cst_8 : f32 to vector<8x32xf32>
    %17 = arith.maximumf %15, %16 : vector<8x32xf32>
    %cst_9 = arith.constant 0.000000e+00 : f32
    %18 = vector.broadcast %cst_9 : f32 to vector<8x32xf32>
    %19 = arith.cmpf oeq, %17, %18 : vector<8x32xf32>
    %20 = arith.extui %19 : vector<8x32xi1> to vector<8x32xi32>
    %21 = arith.sitofp %20 : vector<8x32xi32> to vector<8x32xf32>
    %cst_10 = arith.constant 1.000000e+00 : f32
    %22 = vector.broadcast %cst_10 : f32 to vector<8x32xf32>
    %23 = arith.subf %22, %21 : vector<8x32xf32>
    %cst_11 = arith.constant 1.000000e-16 : f32
    %24 = vector.broadcast %cst_11 : f32 to vector<8x32xf32>
    %25 = arith.mulf %21, %24 : vector<8x32xf32>
    %26 = arith.addf %17, %25 : vector<8x32xf32>
    %27 = math.sqrt %26 : vector<8x32xf32>
    %28 = arith.mulf %23, %27 : vector<8x32xf32>
    %c0_12 = arith.constant 0 : index
    %c0_13 = arith.constant 0 : index
    %29 = vector.load %arg2[%c0_12, %c0_13] : memref<8x1xi32, #tpu.memory_space<vmem>>, vector<8x1xi32>
    %c0_14 = arith.constant 0 : index
    %c0_15 = arith.constant 0 : index
    %30 = vector.load %arg1[%c0_14, %c0_15] : memref<1x32xi32, #tpu.memory_space<vmem>>, vector<1x32xi32>
    %31 = vector.broadcast %29 : vector<8x1xi32> to vector<8x32xi32>
    %32 = vector.broadcast %30 : vector<1x32xi32> to vector<8x32xi32>
    %33 = arith.cmpi eq, %31, %32 : vector<8x32xi32>
    %c8_i32 = arith.constant 8 : i32
    %34 = arith.muli %arg0, %c8_i32 : i32
    %35 = tpu.iota {dimensions = array<i32: 0>} : vector<8x32xi32>
    %36 = vector.broadcast %34 : i32 to vector<8x32xi32>
    %37 = arith.addi %36, %35 : vector<8x32xi32>
    %38 = tpu.iota {dimensions = array<i32: 1>} : vector<8x32xi32>
    %39 = arith.cmpi ne, %37, %38 : vector<8x32xi32>
    %40 = arith.andi %33, %39 : vector<8x32xi1>
    %cst_16 = arith.constant 0.000000e+00 : f32
    %41 = vector.broadcast %cst_16 : f32 to vector<8x32xf32>
    %42 = arith.select %40, %28, %41 : vector<8x32xi1>, vector<8x32xf32>
    %cst_17 = arith.constant dense<0xFF800000> : vector<8xf32>
    %43 = vector.multi_reduction <maximumf>, %42, %cst_17 [1] : vector<8x32xf32> to vector<8xf32>
    %44 = vector.shape_cast %43 : vector<8xf32> to vector<8x1xf32>
    %cst_18 = arith.constant dense<0xFF800000> : vector<8xf32>
    %45 = vector.multi_reduction <maximumf>, %28, %cst_18 [1] : vector<8x32xf32> to vector<8xf32>
    %46 = vector.shape_cast %45 : vector<8xf32> to vector<8x1xf32>
    %47 = vector.broadcast %46 : vector<8x1xf32> to vector<8x32xf32>
    %48 = arith.addf %28, %47 : vector<8x32xf32>
    %49 = arith.select %33, %48, %28 : vector<8x32xi1>, vector<8x32xf32>
    %cst_19 = arith.constant dense<0x7F800000> : vector<8xf32>
    %50 = vector.multi_reduction <minimumf>, %49, %cst_19 [1] : vector<8x32xf32> to vector<8xf32>
    %51 = vector.shape_cast %50 : vector<8xf32> to vector<8x1xf32>
    %52 = arith.subf %44, %51 : vector<8x1xf32>
    %53 = math.exp %52 : vector<8x1xf32>
    %54 = math.log1p %53 : vector<8x1xf32>
    %c0_20 = arith.constant 0 : index
    %c0_21 = arith.constant 0 : index
    %55 = vector.load %arg5[%c0_20, %c0_21] : memref<1x1xf32, #tpu.memory_space<vmem>>, vector<1x1xf32>
    %cst_22 = arith.constant dense<0.000000e+00> : vector<1xf32>
    %56 = vector.multi_reduction <add>, %54, %cst_22 [0] : vector<8x1xf32> to vector<1xf32>
    %57 = vector.shape_cast %56 : vector<1xf32> to vector<1x1xf32>
    %58 = arith.addf %55, %57 : vector<1x1xf32>
    %c0_23 = arith.constant 0 : index
    %c0_24 = arith.constant 0 : index
    %59 = vector.load %arg5[%c0_23, %c0_24] : memref<1x1xf32, #tpu.memory_space<vmem>>, vector<1x1xf32>
    tpu.vector_store %arg5[%c0_23, %c0_24], %58 {strides = array<i32>} : memref<1x1xf32, #tpu.memory_space<vmem>>, vector<1x1xf32>,
    %c3_i32 = arith.constant 3 : i32
    %60 = arith.cmpi eq, %arg0, %c3_i32 : i32
    %61 = arith.extui %60 : i1 to i32
    %c0_i32_25 = arith.constant 0 : i32
    %62 = arith.cmpi ne, %61, %c0_i32_25 : i32
    scf.if %62 {
      %c0_26 = arith.constant 0 : index
      %c0_27 = arith.constant 0 : index
      %63 = vector.load %arg5[%c0_26, %c0_27] : memref<1x1xf32, #tpu.memory_space<vmem>>, vector<1x1xf32>
      %cst_28 = arith.constant 3.125000e-02 : f32
      %64 = vector.broadcast %cst_28 : f32 to vector<1x1xf32>
      %65 = arith.mulf %63, %64 : vector<1x1xf32>
      %c0_29 = arith.constant 0 : index
      %c0_30 = arith.constant 0 : index
      %66 = vector.load %arg5[%c0_29, %c0_30] : memref<1x1xf32, #tpu.memory_space<vmem>>, vector<1x1xf32>
      tpu.vector_store %arg5[%c0_29, %c0_30], %65 {strides = array<i32>} : memref<1x1xf32, #tpu.memory_space<vmem>>, vector<1x1xf32>,
    } else {
    }
    return
  }
  func.func @transform_0(%arg0: i32) -> (i32, i32) {
    %c0_i32 = arith.constant 0 : i32
    %c0_i32_0 = arith.constant 0 : i32
    %c0_i32_1 = arith.constant 0 : i32
    return %c0_i32, %c0_i32_0 : i32, i32
  }
  func.func @transform_1(%arg0: i32) -> (i32, i32) {
    %c0_i32 = arith.constant 0 : i32
    %c0_i32_0 = arith.constant 0 : i32
    return %arg0, %c0_i32 : i32, i32
  }
  func.func @transform_2(%arg0: i32) -> (i32, i32) {
    %c0_i32 = arith.constant 0 : i32
    %c0_i32_0 = arith.constant 0 : i32
    return %arg0, %c0_i32 : i32, i32
  }
  func.func @transform_3(%arg0: i32) -> (i32, i32) {
    %c0_i32 = arith.constant 0 : i32
    %c0_i32_0 = arith.constant 0 : i32
    %c0_i32_1 = arith.constant 0 : i32
    return %c0_i32, %c0_i32_0 : i32, i32
  }
  func.func @transform_4(%arg0: i32) -> (i32, i32) {
    %c0_i32 = arith.constant 0 : i32
    %c0_i32_0 = arith.constant 0 : i32
    %c0_i32_1 = arith.constant 0 : i32
    return %c0_i32, %c0_i32_0 : i32, i32
  }
}

</mosaic_0001>

<llo_original>
// kernel: tpu_custom_call.1
$region0: #{tpu_custom_call.1}
  #allocation0 [shape = 'u32[]', space=smem, size = 0x4, offset = 0x4, fixed_abs, tag = 'smem constant byte address 0x4 - core index']
  #allocation1 [shape = 'u32[144,128]{1,0:T(1,128)}', space=vmem, size = 0x12000, scoped, tag = 'internal scratch']
  #allocation2 [shape = 'f32[1,32]{1,0:T(1,128)}', space=vmem, size = 0x200, scoped, tag = 'scratch operand']
  %s0 = inlined_call_operand.vmem [shape: s32[1,32], index: 0, kind: input, shape index: {}]
  %s1 = inlined_call_operand.vmem [shape: s32[32,1], index: 1, kind: input, shape index: {}]
  %s2 = inlined_call_operand.vmem [shape: f32[32,128], index: 2, kind: input, shape index: {}]
  %s3 = inlined_call_operand.hbm [shape: f32[32,128], index: 3, kind: input, shape index: {}]
  %s4 = inlined_call_operand.hbm [shape: f32[1,1], index: 4, kind: output, shape index: {}]
  %s5 = sld [smem:[#allocation0]]
  $region61: #{tpu_custom_call.1} parent=0
    _
  %s7 = ssub.s32 1, %s5
  %s8 = scalar_select 0, %s7, %s5
  $region1: #{tpu_custom_call.1} parent=0
    #allocation3 [shape = 'u8[16384]{0}', space=vmem, size = 0x4000, scoped, tag = 'input window, operand 3, single buffered']
    #allocation4 [shape = 's32[2]{0}', space=sflag, size = 0x8, scoped, tag = 'scoped memory for tpu_custom_call.1']
    #allocation5 [shape = 's32[2]{0}', space=sflag, size = 0x8, scoped, tag = 'scoped memory for tpu_custom_call.1']
    #allocation6 [shape = 'u8[512]{0}', space=vmem, size = 0x400, scoped, tag = 'output window, operand 0, single buffered']
    %9 = vsyncpa [#allocation4], 0
    %10 = vsyncpa [#allocation5], 0
    loop: start=0, step=1, limit=6
    $region2: #{tpu_custom_call.1} parent=1 // loop_pre_header
      _
    $region3: #{tpu_custom_call.1} parent=1 // loop_header
      %s12 = sphi 0, %s16
      %p13 = scmp.ge.s32.totalorder %s12, 6
      %s20 = sphi 0, %s20
      %s22 = sphi 0, %s20
      %s23 = sphi 0, %s22
      %s37 = sphi 0, %s23
      %s43 = sphi 0, %s45
      %s46 = sphi 0, %s43
      %s47 = sphi 0, %s46
      %s63 = sphi 0, %s47
      %s69 = sphi 0, %s71
      %s72 = sphi 0, %s69
      %s73 = sphi 0, %s72
      %s89 = sphi 0, %s73
      %s93 = sphi 0, %s93
      %s95 = sphi 0, %s93
      %s96 = sphi 0, %s95
      %s110 = sphi 0, %s96
      %s114 = sphi 0, %s114
      %s116 = sphi 0, %s114
      %s117 = sphi 0, %s116
      %s131 = sphi 0, %s117
    $region4: #{tpu_custom_call.1} parent=1 // loop_header_branch
      %15 = sbr.rel (%p13) target = $region8
    $region5: #{tpu_custom_call.1} parent=1 // loop_body
      %s17 = ssub.s32 %s12, 1
      %s18 = ssub.s32 %s12, 2
      %s19 = sadd.s32 %s12, 1
      %s21 = sadd.s32 %s20, 1
      %p24 = scmp.eq.s32.totalorder %s12, 3
      %p25 = scmp.ne.s32.totalorder %s20, %s22
      %p26 = scmp.eq.s32.totalorder %s12, 0
      %p27 = por %p25, %p26
      %p28 = scmp.ne.s32.totalorder %s20, %s22
      %p29 = scmp.eq.s32.totalorder %s17, 3
      %p30 = por %p28, %p29
      %p31 = scmp.ne.s32.totalorder %s22, %s23
      %p32 = scmp.eq.s32.totalorder %s17, 0
      %p33 = por %p31, %p32
      %p34 = scmp.ne.s32.totalorder %s22, %s23
      %p35 = scmp.eq.s32.totalorder %s18, 3
      %p36 = por %p34, %p35
      %p38 = scmp.ne.s32.totalorder %s23, %s37
      %p39 = scmp.eq.s32.totalorder %s18, 0
      %p40 = por %p38, %p39
      %s41 = ssub.s32 %s12, %s19
      %p42 = scmp.eq.s32.totalorder %s41, 0
      %s44 = sadd.s32 %s43, 1
      %s45 = scalar_select %p42, %s43, %s44
      %p48 = pneg %p42
      %p49 = scmp.eq.s32.totalorder %s12, 3
      %p50 = por %p48, %p49
      %p51 = scmp.ne.s32.totalorder %s43, %s46
      %p52 = scmp.eq.s32.totalorder %s12, 0
      %p53 = por %p51, %p52
      %p54 = scmp.ne.s32.totalorder %s43, %s46
      %p55 = scmp.eq.s32.totalorder %s17, 3
      %p56 = por %p54, %p55
      %p57 = scmp.ne.s32.totalorder %s46, %s47
      %p58 = scmp.eq.s32.totalorder %s17, 0
      %p59 = por %p57, %p58
      %p60 = scmp.ne.s32.totalorder %s46, %s47
      %p61 = scmp.eq.s32.totalorder %s18, 3
      %p62 = por %p60, %p61
      %p64 = scmp.ne.s32.totalorder %s47, %s63
      %p65 = scmp.eq.s32.totalorder %s18, 0
      %p66 = por %p64, %p65
      %s67 = ssub.s32 %s12, %s19
      %p68 = scmp.eq.s32.totalorder %s67, 0
      %s70 = sadd.s32 %s69, 1
      %s71 = scalar_select %p68, %s69, %s70
      %p74 = pneg %p68
      %p75 = scmp.eq.s32.totalorder %s12, 3
      %p76 = por %p74, %p75
      %p77 = scmp.ne.s32.totalorder %s69, %s72
      %p78 = scmp.eq.s32.totalorder %s12, 0
      %p79 = por %p77, %p78
      %p80 = scmp.ne.s32.totalorder %s69, %s72
      %p81 = scmp.eq.s32.totalorder %s17, 3
      %p82 = por %p80, %p81
      %p83 = scmp.ne.s32.totalorder %s72, %s73
      %p84 = scmp.eq.s32.totalorder %s17, 0
      %p85 = por %p83, %p84
      %p86 = scmp.ne.s32.totalorder %s72, %s73
      %p87 = scmp.eq.s32.totalorder %s18, 3
      %p88 = por %p86, %p87
      %p90 = scmp.ne.s32.totalorder %s73, %s89
      %p91 = scmp.eq.s32.totalorder %s18, 0
      %p92 = por %p90, %p91
      %s94 = sadd.s32 %s93, 1
      %p97 = scmp.eq.s32.totalorder %s12, 3
      %p98 = scmp.ne.s32.totalorder %s93, %s95
      %p99 = scmp.eq.s32.totalorder %s12, 0
      %p100 = por %p98, %p99
      %p101 = scmp.ne.s32.totalorder %s93, %s95
      %p102 = scmp.eq.s32.totalorder %s17, 3
      %p103 = por %p101, %p102
      %p104 = scmp.ne.s32.totalorder %s95, %s96
      %p105 = scmp.eq.s32.totalorder %s17, 0
      %p106 = por %p104, %p105
      %p107 = scmp.ne.s32.totalorder %s95, %s96
      %p108 = scmp.eq.s32.totalorder %s18, 3
      %p109 = por %p107, %p108
      %p111 = scmp.ne.s32.totalorder %s96, %s110
      %p112 = scmp.eq.s32.totalorder %s18, 0
      %p113 = por %p111, %p112
      %s115 = sadd.s32 %s114, 1
      %p118 = scmp.eq.s32.totalorder %s12, 3
      %p119 = scmp.ne.s32.totalorder %s114, %s116
      %p120 = scmp.eq.s32.totalorder %s12, 0
      %p121 = por %p119, %p120
      %p122 = scmp.ne.s32.totalorder %s114, %s116
      %p123 = scmp.eq.s32.totalorder %s17, 3
      %p124 = por %p122, %p123
      %p125 = scmp.ne.s32.totalorder %s116, %s117
      %p126 = scmp.eq.s32.totalorder %s17, 0
      %p127 = por %p125, %p126
      %p128 = scmp.ne.s32.totalorder %s116, %s117
      %p129 = scmp.eq.s32.totalorder %s18, 3
      %p130 = por %p128, %p129
      %p132 = scmp.ne.s32.totalorder %s117, %s131
      %p133 = scmp.eq.s32.totalorder %s18, 0
      %p134 = por %p132, %p133
      %p135 = scmp.le.s32.totalorder 1, %s12
      %p136 = scmp.lt.s32.totalorder %s12, 5
      %p137 = pnand %p135, %p136
      %p138 = pneg %p137
      // Predicated region
      $region9: #{tpu_custom_call.1} parent=5 // pred_check
        _
      $region10: #{tpu_custom_call.1} parent=5 // pred_check_branch
        %140 = sbr.rel (%p137) target = $region12
      $region11: #{tpu_custom_call.1} parent=5 // pred_region
        %s141 = ssub.s32 %s12, 1
        // Predicated region
        $region13: #{tpu_custom_call.1} parent=11 // pred_check
          %p142 = pneg %p33
        $region14: #{tpu_custom_call.1} parent=11 // pred_check_branch
          %144 = sbr.rel (%p142) target = $region16
        $region15: #{tpu_custom_call.1} parent=11 // pred_region
          _
        $region16: #{tpu_custom_call.1} parent=11 // pred_fallthru
          _
        // Predicated region
        $region17: #{tpu_custom_call.1} parent=11 // pred_check
          %p145 = pneg %p106
        $region18: #{tpu_custom_call.1} parent=11 // pred_check_branch
          %147 = sbr.rel (%p145) target = $region20
        $region19: #{tpu_custom_call.1} parent=11 // pred_region
          %s149 = ssub.s32 512, 512
          %150 = vsyncadd [#allocation4], %s149
          %s151 = sshll.u32 [#allocation3], 4
          %s152 = int_to_ptr.vmem [resolvable:$true] %s151
          %157 = dma.hbm_to_vmem [thread:$0]  %s3, 512, %s152, [#allocation4], 128, 128, 8
        $region20: #{tpu_custom_call.1} parent=11 // pred_fallthru
          _
      $region12: #{tpu_custom_call.1} parent=5 // pred_fallthru
        _
      %p158 = scmp.lt.s32.totalorder %s12, 4
      // Predicated region
      $region21: #{tpu_custom_call.1} parent=5 // pred_check
        %p159 = pneg %p158
      $region22: #{tpu_custom_call.1} parent=5 // pred_check_branch
        %161 = sbr.rel (%p159) target = $region24
      $region23: #{tpu_custom_call.1} parent=5 // pred_region
        // Predicated region
        $region25: #{tpu_custom_call.1} parent=23 // pred_check
          %p162 = pneg %p53
        $region26: #{tpu_custom_call.1} parent=23 // pred_check_branch
          %164 = sbr.rel (%p162) target = $region28
        $region27: #{tpu_custom_call.1} parent=23 // pred_region
          %p165 = scmp.lt.s32.totalorder %s12, 3
          %s166 = scalar_select %p165, %s12, 3
          %s167 = smul.addr %s166, 8
          %s168 = scalar_lea.vmem %s1, %s167
        $region28: #{tpu_custom_call.1} parent=23 // pred_fallthru
          _
        // Predicated region
        $region29: #{tpu_custom_call.1} parent=23 // pred_check
          %p169 = pneg %p79
        $region30: #{tpu_custom_call.1} parent=23 // pred_check_branch
          %171 = sbr.rel (%p169) target = $region32
        $region31: #{tpu_custom_call.1} parent=23 // pred_region
          %p172 = scmp.lt.s32.totalorder %s12, 3
          %s173 = scalar_select %p172, %s12, 3
          %s174 = smul.addr %s173, 8
          %s175 = scalar_lea.vmem %s2, %s174
        $region32: #{tpu_custom_call.1} parent=23 // pred_fallthru
          _
      $region24: #{tpu_custom_call.1} parent=5 // pred_fallthru
        _
      %p176 = scmp.le.s32.totalorder 1, %s12
      %p177 = scmp.lt.s32.totalorder %s12, 5
      %p178 = pnand %p176, %p177
      %p179 = pneg %p178
      // Predicated region
      $region33: #{tpu_custom_call.1} parent=5 // pred_check
        _
      $region34: #{tpu_custom_call.1} parent=5 // pred_check_branch
        %181 = sbr.rel (%p178) target = $region36
      $region35: #{tpu_custom_call.1} parent=5 // pred_region
        %s182 = ssub.s32 %s12, 1
        // Predicated region
        $region37: #{tpu_custom_call.1} parent=35 // pred_check
          %p183 = pneg %p106
        $region38: #{tpu_custom_call.1} parent=35 // pred_check_branch
          %185 = sbr.rel (%p183) target = $region40
        $region39: #{tpu_custom_call.1} parent=35 // pred_region
          %186 = dma.done [#allocation4], 512
        $region40: #{tpu_custom_call.1} parent=35 // pred_fallthru
          _
        %p187 = pneg %p33
        %p188 = pneg %p30
        %p189 = scmp.lt.s32.totalorder %s17, 3
        %s190 = scalar_select %p189, %s17, 3
        %s191 = smul.addr %s190, 8
        %s192 = scalar_lea.vmem %s1, %s191
        %p193 = pneg %p59
        %p194 = pneg %p56
        %p195 = scmp.lt.s32.totalorder %s17, 3
        %s196 = scalar_select %p195, %s17, 3
        %s197 = smul.addr %s196, 8
        %s198 = scalar_lea.vmem %s2, %s197
        %p199 = pneg %p85
        %p200 = pneg %p82
        %p201 = pneg %p106
        %p202 = pneg %p103
        %p203 = pneg %p127
        %p204 = pneg %p124
        %p205 = scmp.lt.s32.totalorder %s17, 3
        %s206 = scalar_select %p205, %s17, 3
        %s207 = smul.addr %s206, 8
        %s208 = scalar_lea.vmem %s1, %s207
        %p209 = scmp.lt.s32.totalorder %s17, 3
        %s210 = scalar_select %p209, %s17, 3
        %s211 = smul.addr %s210, 8
        %s212 = scalar_lea.vmem %s2, %s211
        %v213 = vld [vmem:[%s212] sm:$0xff]
        %v214 = vld [vmem:[#allocation3] sm:$0xff]
        %v215 = vld [vmem:[#allocation3 + $0x8] sm:$0xff]
        %v216 = vld [vmem:[#allocation3 + $0x10] sm:$0xff]
        %v217 = vld [vmem:[#allocation3 + $0x18] sm:$0xff]
        %218 = vmatprep.subr.mxu0 0.0
        %219 = vmatpush1.xpose.msra.mxu0 %v214
        %220 = vmatprep.subr.mxu0 0.0
        %221 = vmatpush1.xpose.msra.mxu0 %v215
        %222 = vmatprep.subr.mxu0 0.0
        %223 = vmatpush1.xpose.msra.mxu0 %v216
        %224 = vmatprep.subr.mxu0 0.0
        %225 = vmatpush1.xpose.msra.mxu0 %v217
        %226 = vmatprep.subr.mxu0 0.0
        %227 = vmatpush1.xpose.msra.mxu0 0.0
        %228 = vmatprep.subr.mxu0 0.0
        %229 = vmatpush1.xpose.msra.mxu0 0.0
        %230 = vmatprep.subr.mxu0 0.0
        %231 = vmatpush1.xpose.msra.mxu0 0.0
        %232 = vmatprep.subr.mxu0 0.0
        %233 = vmatpush1.xpose.msra.mxu0 0.0
        %234 = vmatprep.subr.mxu0 0.0
        %235 = vmatpush1.xpose.msra.mxu0 0.0
        %236 = vmatprep.subr.mxu0 0.0
        %237 = vmatpush1.xpose.msra.mxu0 0.0
        %238 = vmatprep.subr.mxu0 0.0
        %239 = vmatpush1.xpose.msra.mxu0 0.0
        %240 = vmatprep.subr.mxu0 0.0
        %241 = vmatpush1.xpose.msra.mxu0 0.0
        %242 = vmatprep.subr.mxu0 0.0
        %243 = vmatpush1.xpose.msra.mxu0 0.0
        %244 = vmatprep.subr.mxu0 0.0
        %245 = vmatpush1.xpose.msra.mxu0 0.0
        %246 = vmatprep.subr.mxu0 0.0
        %247 = vmatpush1.xpose.msra.mxu0 0.0
        %248 = vmatprep.subr.mxu0 0.0
        %249 = vmatpush1.xpose.msra.mxu0 0.0
        %250 = vmatprep.subr.mxu0 0.0
        %251 = vmatpush1.xpose.msra.mxu0 0.0
        %252 = vmatprep.subr.mxu0 0.0
        %253 = vmatpush1.xpose.msra.mxu0 0.0
        %254 = vmatprep.subr.mxu0 0.0
        %255 = vmatpush1.xpose.msra.mxu0 0.0
        %256 = vmatprep.subr.mxu0 0.0
        %257 = vmatpush1.xpose.msra.mxu0 0.0
        %258 = vmatprep.subr.mxu0 0.0
        %259 = vmatpush1.xpose.msra.mxu0 0.0
        %260 = vmatprep.subr.mxu0 0.0
        %261 = vmatpush1.xpose.msra.mxu0 0.0
        %262 = vmatprep.subr.mxu0 0.0
        %263 = vmatpush1.xpose.msra.mxu0 0.0
        %264 = vmatprep.subr.mxu0 0.0
        %265 = vmatpush1.xpose.msra.mxu0 0.0
        %266 = vmatprep.subr.mxu0 0.0
        %267 = vmatpush1.xpose.msra.mxu0 0.0
        %268 = vmatprep.subr.mxu0 0.0
        %269 = vmatpush1.xpose.msra.mxu0 0.0
        %270 = vmatprep.subr.mxu0 0.0
        %271 = vmatpush1.xpose.msra.mxu0 0.0
        %272 = vmatprep.subr.mxu0 0.0
        %273 = vmatpush1.xpose.msra.mxu0 0.0
        %274 = vmatprep.subr.mxu0 0.0
        %275 = vmatpush1.xpose.msra.mxu0 0.0
        %276 = vmatprep.subr.mxu0 0.0
        %277 = vmatpush1.xpose.msra.mxu0 0.0
        %278 = vmatprep.subr.mxu0 0.0
        %279 = vmatpush1.xpose.msra.mxu0 0.0
        %280 = vmatprep.subr.mxu0 0.0
        %281 = vmatpush1.xpose.msra.mxu0 0.0
        %282 = vmatprep.mubr.f32.mxu0 0.0
        %283 = vmatmul.mubr.f32.gmra.mrb[0].mxu0 %v213
        %v284 = vpop.f32.mrb[0].mxu0
        %v285 = vadd.f32 0.0, %v284
        %v286 = vpop.f32.mrb[0].mxu0
        %287 = vdwg.mxu0
        %v288 = vmul.f32 %v213, %v213
        %289 = vadd.xlane.f32.xlu0 %v288
        %v290 = vpop.xlane.xlu0 %289
        %p291 = scmp.eq.s32.totalorder %s17, 0
        // Predicated region
        $region41: #{tpu_custom_call.1} parent=35 // pred_check
          %p292 = pneg %p291
        $region42: #{tpu_custom_call.1} parent=35 // pred_check_branch
          %294 = sbr.rel (%p292) target = $region44
        $region43: #{tpu_custom_call.1} parent=35 // pred_region
          %v295 = vmul.f32 %v214, %v214
          %v296 = vmul.f32 %v215, %v215
          %v297 = vmul.f32 %v216, %v216
          %v298 = vmul.f32 %v217, %v217
          %299 = vmatprep.subr.mxu0 0.0
          %300 = vmatpush1.xpose.msra.mxu0 %v295
          %301 = vmatprep.subr.mxu0 0.0
          %302 = vmatpush1.xpose.msra.mxu0 %v296
          %303 = vmatprep.subr.mxu0 0.0
          %304 = vmatpush1.xpose.msra.mxu0 %v297
          %305 = vmatprep.subr.mxu0 0.0
          %306 = vmatpush1.xpose.msra.mxu0 %v298
          %307 = vmatprep.subr.mxu0 0.0
          %308 = vmatpush1.xpose.msra.mxu0 0.0
          %309 = vmatprep.subr.mxu0 0.0
          %310 = vmatpush1.xpose.msra.mxu0 0.0
          %311 = vmatprep.subr.mxu0 0.0
          %312 = vmatpush1.xpose.msra.mxu0 0.0
          %313 = vmatprep.subr.mxu0 0.0
          %314 = vmatpush1.xpose.msra.mxu0 0.0
          %315 = vmatprep.subr.mxu0 0.0
          %316 = vmatpush1.xpose.msra.mxu0 0.0
          %317 = vmatprep.subr.mxu0 0.0
          %318 = vmatpush1.xpose.msra.mxu0 0.0
          %319 = vmatprep.subr.mxu0 0.0
          %320 = vmatpush1.xpose.msra.mxu0 0.0
          %321 = vmatprep.subr.mxu0 0.0
          %322 = vmatpush1.xpose.msra.mxu0 0.0
          %323 = vmatprep.subr.mxu0 0.0
          %324 = vmatpush1.xpose.msra.mxu0 0.0
          %325 = vmatprep.subr.mxu0 0.0
          %326 = vmatpush1.xpose.msra.mxu0 0.0
          %327 = vmatprep.subr.mxu0 0.0
          %328 = vmatpush1.xpose.msra.mxu0 0.0
          %329 = vmatprep.subr.mxu0 0.0
          %330 = vmatpush1.xpose.msra.mxu0 0.0
          %331 = vmatprep.subr.mxu0 0.0
          %332 = vmatpush1.xpose.msra.mxu0 0.0
          %333 = vmatprep.subr.mxu0 0.0
          %334 = vmatpush1.xpose.msra.mxu0 0.0
          %335 = vmatprep.subr.mxu0 0.0
          %336 = vmatpush1.xpose.msra.mxu0 0.0
          %337 = vmatprep.subr.mxu0 0.0
          %338 = vmatpush1.xpose.msra.mxu0 0.0
          %339 = vmatprep.subr.mxu0 0.0
          %340 = vmatpush1.xpose.msra.mxu0 0.0
          %341 = vmatprep.subr.mxu0 0.0
          %342 = vmatpush1.xpose.msra.mxu0 0.0
          %343 = vmatprep.subr.mxu0 0.0
          %344 = vmatpush1.xpose.msra.mxu0 0.0
          %345 = vmatprep.subr.mxu0 0.0
          %346 = vmatpush1.xpose.msra.mxu0 0.0
          %347 = vmatprep.subr.mxu0 0.0
          %348 = vmatpush1.xpose.msra.mxu0 0.0
          %349 = vmatprep.subr.mxu0 0.0
          %350 = vmatpush1.xpose.msra.mxu0 0.0
          %351 = vmatprep.subr.mxu0 0.0
          %352 = vmatpush1.xpose.msra.mxu0 0.0
          %353 = vmatprep.subr.mxu0 0.0
          %354 = vmatpush1.xpose.msra.mxu0 0.0
          %355 = vmatprep.subr.mxu0 0.0
          %356 = vmatpush1.xpose.msra.mxu0 0.0
          %357 = vmatprep.subr.mxu0 0.0
          %358 = vmatpush1.xpose.msra.mxu0 0.0
          %359 = vmatprep.subr.mxu0 0.0
          %360 = vmatpush1.xpose.msra.mxu0 0.0
          %361 = vmatprep.subr.mxu0 0.0
          %362 = vmatpush1.xpose.msra.mxu0 0.0
          %363 = vmatprep.mubr.f32.mxu0 0.0
          %364 = vmatmul.mubr.f32.gmra.mrb[0].mxu0 1.0
          %v365 = vpop.f32.mrb[0].mxu0
          %v366 = vadd.f32 0.0, %v365
          %v367 = vpop.f32.mrb[0].mxu0
          %368 = vdwg.mxu0
          %vm369 = vcmask 253952
          %370 = vst.msk [vmem:[#allocation2] sm:$0x1] %vm369, %v366
          %vm371 = vcmask 0
          %372 = vst.msk [vmem:[#allocation6] sm:$0x1] %vm371, 0.0
        $region44: #{tpu_custom_call.1} parent=35 // pred_fallthru
          _
        %v373 = vld [vmem:[#allocation2] sm:$0x1]
        %v374 = vmul.f32 %v285, 2.0
        %v376 = vlaneseq
        %v377 = vshrl.u32 %v376, 7
        %v378 = vsub.s32 0, %v377
        %v379 = vrot.slane %v373, %v378
        %v381 = vsub.f32 %v379, %v374
        %v382 = vadd.f32 %v381, %v290
        %v383 = vmax.f32 %v382, 0.0
        %vm384 = vcmp.eq.f32.partialorder %v383, 0.0
        %v385 = vsel %vm384, 1, 0
        %v386 = vcvt.s32.f32 %v385
        %v387 = vsub.f32 1.0, %v386
        %v388 = vmul.f32 %v386, 1e-16
        %v389 = vadd.f32 %v383, %v388
        %v390 = vrsqrt.pop %v389
        %v391 = vmul.f32 %v389, %v390
        %vm392 = vcmp.eq.f32.partialorder %v389, inf
        %v393 = vsel %vm392, %v389, %v391
        %vm394 = vcmp.eq.f32.partialorder %v389, 0.0
        %v395 = vand.u32 %v389, 2147483648
        %v396 = vsel %vm394, %v395, %v393
        %v397 = vmul.f32 %v387, %v396
        %v398 = vld [vmem:[%s208] sm:$0xff]
        %v399 = vld [vmem:[%s0] sm:$0x1]
        %400 = vset.pattern.permute.xlu0 0
        %401 = vperm.xlu0 %400, %v398
        %v402 = vpop.permute.xlu0 %401
        %v403 = vlaneseq
        %v404 = vshrl.u32 %v403, 7
        %v405 = vsub.s32 0, %v404
        %v406 = vrot.slane %v399, %v405
        %vm407 = vcmp.eq.s32.totalorder %v402, %v406
        %s408 = smul.u32 %s17, 8
        %v409 = vlaneseq
        %v410 = vshrl.u32 %v409, 7
        %v411 = vstv %s408
        %v412 = vadd.s32 %v411, %v410
        %v413 = vlaneseq
        %v414 = vand.u32 %v413, 127
        %vm415 = vcmp.ne.s32.totalorder %v412, %v414
        %vm416 = vmand %vm407, %vm415
        %v417 = vsel %vm416, %v397, 0.0
        %vm418 = vcmask 261120
        %v419 = vsel %vm418, %v417, -inf
        %420 = vmax.xlane.f32.xlu0 %v419
        %v421 = vpop.xlane.xlu0 %420
        %v422 = vsel %vm418, %v397, -inf
        %423 = vmax.xlane.f32.xlu0 %v422
        %v424 = vpop.xlane.xlu0 %423
        %v425 = vadd.f32 %v397, %v424
        %v426 = vsel %vm407, %v425, %v397
        %v427 = vsel %vm418, %v426, inf
        %428 = vmin.xlane.f32.xlu0 %v427
        %v429 = vpop.xlane.xlu0 %428
        %v430 = vsub.f32 %v421, %v429
        %v431 = vmul.f32 %v430, 1.442695
        %v432 = vpow.pop %v431
        %v433 = vadd.f32 %v432, 1.0
        %v434 = vlog2.pop %v433
        %v435 = vmul.f32 %v434, 0.6931472
        %v436 = vmul.f32 -0.5, %v432
        %v437 = vadd.f32 %v436, 1.0
        %v438 = vmul.f32 %v437, %v432
        %v439 = vand.u32 2147483647, %v432
        %vm440 = vcmp.lt.f32.partialorder %v439, 0.0004427343
        %v441 = vsel %vm440, %v438, %v435
        %v442 = vld [vmem:[#allocation6] sm:$0x1]
        %v443 = vrot.slane %v441, 4
        %v444 = vadd.f32 %v441, %v443
        %v445 = vrot.slane %v444, 2
        %v446 = vadd.f32 %v444, %v445
        %v447 = vrot.slane %v446, 1
        %v448 = vadd.f32 %v446, %v447
        %v449 = vadd.f32 %v442, %v448
        %vm450 = vcmask 0
        %451 = vst.msk [vmem:[#allocation6] sm:$0x1] %vm450, %v449
        %p452 = scmp.eq.s32.totalorder %s17, 3
        // Predicated region
        $region45: #{tpu_custom_call.1} parent=35 // pred_check
          %p453 = pneg %p452
        $region46: #{tpu_custom_call.1} parent=35 // pred_check_branch
          %455 = sbr.rel (%p453) target = $region48
        $region47: #{tpu_custom_call.1} parent=35 // pred_region
          %v456 = vld [vmem:[#allocation6] sm:$0x1]
          %v457 = vmul.f32 %v456, 0.03125
          %458 = vst.msk [vmem:[#allocation6] sm:$0x1] %vm450, %v457
        $region48: #{tpu_custom_call.1} parent=35 // pred_fallthru
          _
        // Predicated region
        $region49: #{tpu_custom_call.1} parent=35 // pred_check
          %p459 = pneg %p124
        $region50: #{tpu_custom_call.1} parent=35 // pred_check_branch
          %461 = sbr.rel (%p459) target = $region52
        $region51: #{tpu_custom_call.1} parent=35 // pred_region
          %s463 = ssub.s32 16, 16
          %464 = vsyncadd [#allocation5], %s463
          %s466 = sshll.u32 [#allocation6], 4
          %s467 = int_to_ptr.vmem [resolvable:$true] %s466
          %469 = dma.vmem_to_hbm [thread:$0]  %s467, 16, %s4, [#allocation5]
        $region52: #{tpu_custom_call.1} parent=35 // pred_fallthru
          _
        // Predicated region
        $region53: #{tpu_custom_call.1} parent=35 // pred_check
          %p470 = pneg %p124
        $region54: #{tpu_custom_call.1} parent=35 // pred_check_branch
          %472 = sbr.rel (%p470) target = $region56
        $region55: #{tpu_custom_call.1} parent=35 // pred_region
          %473 = dma.done [#allocation5], 16
        $region56: #{tpu_custom_call.1} parent=35 // pred_fallthru
          _
      $region36: #{tpu_custom_call.1} parent=5 // pred_fallthru
        _
      %p474 = scmp.le.s32.totalorder 2, %s12
      // Predicated region
      $region57: #{tpu_custom_call.1} parent=5 // pred_check
        %p475 = pneg %p474
      $region58: #{tpu_custom_call.1} parent=5 // pred_check_branch
        %477 = sbr.rel (%p475) target = $region60
      $region59: #{tpu_custom_call.1} parent=5 // pred_region
        %s478 = ssub.s32 %s12, 2
      $region60: #{tpu_custom_call.1} parent=5 // pred_fallthru
        _
    $region6: #{tpu_custom_call.1} parent=1 // loop_footer
      %s16 = sadd.s32 1, %s12
    $region7: #{tpu_custom_call.1} parent=1 // loop_footer_branch
      %11 = sbr.rel target = $region3
    $region8: #{tpu_custom_call.1} parent=1 // loop_exit
      _
    %479 = vsyncpa [#allocation4], 1
    %s480 = scalar_lea.sflag [#allocation4], 1
    %481 = vsyncpa %s480, 1
    %482 = vsyncpa [#allocation5], 1
    %s483 = scalar_lea.sflag [#allocation5], 1
    %484 = vsyncpa %s483, 1

</llo_original>
